<compile_context>
chip_gen: v5e
topology: v5e:2x2
jax: 0.10.0
libtpu: 0.0.40
codegen_flags: <defaults>
</compile_context>

<pallas_src>
import jax
import jax.numpy as jnp
from jax.experimental import pallas as pl
from jax.experimental.pallas import tpu as pltpu

BN_EPS = 1e-5


def _round_up(v, m):
    return ((v + m - 1) // m) * m


def conv_bn_relu(x, weight, bias, gamma, beta, *, padding=0, stride=1):
    """Forward of module C.  x: (N, Cin, H, W) NCHW f32.  Returns (N, Cout, OH, OW) f32."""
    N, Cin, H, W = x.shape
    Cout, _, KH, KW = weight.shape
    # TODO(synk): stride > 1 would need a strided (per-element) compaction of the
    # virtual output grid; only stride == 1 is implemented.
    assert stride == 1, "only stride=1 supported"
    OH = H + 2 * padding - KH + 1
    OW = W + 2 * padding - KW + 1
    OHW = OH * OW
    M = N * OHW                              # total output positions (BN count)
    Hp, Wp = H + 2 * padding, W + 2 * padding
    KK = KH * KW

    # Virtual output grid: one column per padded position q = oh*Wp + ow.  Only
    # q with oh<OH, ow<OW are valid.  Qv (per-image virtual width) is rounded to
    # full vregs so per-image lane blocks stay 128-aligned.
    q_need = (OH - 1) * Wp + OW              # exclusive bound on valid q
    Qv = _round_up(q_need, 128)
    s_max = (KH - 1) * Wp + (KW - 1)         # largest tap shift
    Lx = _round_up(max(s_max + Qv, Hp * Wp), 128)
    Mv = N * Qv

    # ---- layout glue (one small fused XLA op chain) ----
    x_pad = jnp.pad(x, ((0, 0), (0, 0), (padding, padding), (padding, padding)))
    xf = jnp.pad(x_pad.reshape(N, Cin, Hp * Wp), ((0, 0), (0, 0), (0, Lx - Hp * Wp)))
    xf = xf.reshape(N * Cin, Lx).astype(jnp.float32)
    # weight (Cout, Cin, KH, KW) -> (Cout, KH*KW*Cin); column order (kh, kw, c)
    # matches the patch-matrix row order built in-kernel.
    w2 = jnp.transpose(weight, (0, 2, 3, 1)).reshape(Cout, KK * Cin).astype(jnp.bfloat16)
    gamma2 = gamma.reshape(Cout, 1).astype(jnp.float32)
    beta2 = beta.reshape(Cout, 1).astype(jnp.float32)
    # Conv bias is intentionally dropped: with train-mode BN, (y+b) - mean(y+b) == y - mean(y).
    del bias

    def kernel(xf_ref, w_ref, g_ref, b_ref, o_ref, p_ref, yv_ref, yc_ref):
        # xf_ref: (N*Cin, Lx) f32   flattened padded input, spatial axis in lanes
        # w_ref : (Cout, KK*Cin) bf16
        # g_ref, b_ref: (Cout, 1) f32
        # o_ref : (N, Cout, OHW) f32
        # p_ref : (KK*Cin, Mv) f32     patch matrix (virtual grid)
        # yv_ref: (Cout, Mv) f32       conv output on virtual grid
        # yc_ref: (Cout, M)  f32       conv output, compacted

        xv = xf_ref[...]                                        # (N*Cin, Lx)

        # --- fused patch gather: 9 static lane-shifted copies build K = KH*KW*Cin ---
        for kh in range(KH):
            for kw in range(KW):
                t = kh * KW + kw
                s = kh * Wp + kw
                xs = xv[:, s:s + Qv]                            # (N*Cin, Qv)
                p_ref[t * Cin:(t + 1) * Cin, :] = jnp.concatenate(
                    [xs[n * Cin:(n + 1) * Cin, :] for n in range(N)], axis=1)

        # --- one GEMM: (Cout, K) x (K, N*Qv) -> lane-dense (Cout, N*Qv) f32 acc ---
        yv_ref[...] = jnp.dot(w_ref[...], p_ref[...].astype(jnp.bfloat16),
                              preferred_element_type=jnp.float32)

        # --- compact virtual grid (row stride Wp) to OH*OW (row stride OW) ---
        for n in range(N):
            for oh in range(OH):
                src = n * Qv + oh * Wp
                dst = n * OHW + oh * OW
                yc_ref[:, dst:dst + OW] = yv_ref[:, src:src + OW]

        # --- train-mode batch norm (centered two-pass, f32) + ReLU ---
        yc = yc_ref[...]                                        # (Cout, M)
        mean = jnp.sum(yc, axis=1, keepdims=True) * (1.0 / M)
        d = yc - mean
        var = jnp.sum(d * d, axis=1, keepdims=True) * (1.0 / M)
        scale = g_ref[...] * jax.lax.rsqrt(var + BN_EPS)
        out = jnp.maximum(d * scale + b_ref[...], 0.0)          # (Cout, M)

        # --- lane-dense NCHW-shaped writeback ---
        for n in range(N):
            o_ref[n] = out[:, n * OHW:(n + 1) * OHW]

    cost = pl.CostEstimate(
        flops=2 * Cout * KK * Cin * Mv,
        transcendentals=Cout,
        bytes_accessed=int(xf.size) * 4 + int(w2.size) * 2 + M * Cout * 4 + 2 * Cout * 4)

    out3 = pl.pallas_call(
        kernel,
        out_shape=jax.ShapeDtypeStruct((N, Cout, OHW), jnp.float32),
        grid=(1,),
        in_specs=[
            pl.BlockSpec((N * Cin, Lx), lambda i: (0, 0)),
            pl.BlockSpec((Cout, KK * Cin), lambda i: (0, 0)),
            pl.BlockSpec((Cout, 1), lambda i: (0, 0)),
            pl.BlockSpec((Cout, 1), lambda i: (0, 0)),
        ],
        out_specs=pl.BlockSpec((N, Cout, OHW), lambda i: (0, 0, 0)),
        scratch_shapes=[
            pltpu.VMEM((KK * Cin, Mv), jnp.float32),
            pltpu.VMEM((Cout, Mv), jnp.float32),
            pltpu.VMEM((Cout, M), jnp.float32),
        ],
        compiler_params=pltpu.CompilerParams(
            dimension_semantics=("arbitrary",)),   # tiny problem: single TC, no megacore split
        cost_estimate=cost,
    )(xf, w2, gamma2, beta2)

    # TODO(synk): running_mean / running_var buffer updates (train() side effect)
    # of nn.BatchNorm2d are not modeled.
    return out3.reshape(N, Cout, OH, OW)


def _reference(x, weight, bias, gamma, beta, padding, stride):
    """Pure-JAX f32 reference matching PyTorch Conv2d + BatchNorm2d(train) + ReLU."""
    y = jax.lax.conv_general_dilated(
        x, weight, (stride, stride),
        [(padding, padding), (padding, padding)],
        dimension_numbers=("NCHW", "OIHW", "NCHW"))
    y = y + bias[None, :, None, None]
    mean = jnp.mean(y, axis=(0, 2, 3), keepdims=True)
    var = jnp.mean((y - mean) ** 2, axis=(0, 2, 3), keepdims=True)
    y = (y - mean) / jnp.sqrt(var + BN_EPS)
    y = y * gamma[None, :, None, None] + beta[None, :, None, None]
    return jnp.maximum(y, 0.0)


if __name__ == "__main__":
    # Module config: C(in_channels=4, out_channels=8, kernel_size=3, padding=1, stride=1)
    N, Cin, H, W = 2, 4, 16, 16
    Cout, K, PAD, STR = 8, 3, 1, 1

    key = jax.random.PRNGKey(0)
    kx, kw, kb = jax.random.split(key, 3)
    x = jax.random.normal(kx, (N, Cin, H, W), jnp.float32)

    # Deterministic synthetic parameters (shapes from nn.Conv2d / nn.BatchNorm2d __init__).
    weight = 0.1 * jax.random.normal(kw, (Cout, Cin, K, K), jnp.float32)
    bias = 0.1 * jax.random.normal(kb, (Cout,), jnp.float32)
    gamma = jnp.ones((Cout,), jnp.float32)   # BatchNorm2d weight init
    beta = jnp.zeros((Cout,), jnp.float32)   # BatchNorm2d bias init

    out = conv_bn_relu(x, weight, bias, gamma, beta, padding=PAD, stride=STR)
    out = jax.block_until_ready(out)

    ref = _reference(x, weight, bias, gamma, beta, PAD, STR)
    assert out.shape == (N, Cout, H, W), out.shape
    # Tolerance reflects bf16 MXU operands (f32 accumulation + f32 BN math).
    assert jnp.allclose(out, ref, atol=3e-2, rtol=3e-2), float(jnp.max(jnp.abs(out - ref)))

    print("KERNEL_OK")
</pallas_src>

<mosaic_0001>
module attributes {stable_mosaic.version = 11 : i64} {
  func.func @kernel(%arg0: i32, %arg1: memref<8x512xf32, #tpu.memory_space<vmem>>, %arg2: memref<8x36xbf16, #tpu.memory_space<vmem>>, %arg3: memref<8x1xf32, #tpu.memory_space<vmem>>, %arg4: memref<8x1xf32, #tpu.memory_space<vmem>>, %arg5: memref<2x8x256xf32, #tpu.memory_space<vmem>>, %arg6: memref<36x768xf32, #tpu.memory_space<vmem>>, %arg7: memref<8x768xf32, #tpu.memory_space<vmem>>, %arg8: memref<8x512xf32, #tpu.memory_space<vmem>>) attributes {dimension_semantics = [#tpu.dimension_semantics<arbitrary>], iteration_bounds = array<i64: 1>, scalar_prefetch = 0 : i64, scratch_operands = 3 : i64, tpu.core_type = #tpu.core_type<tc>, window_params = [{pipeline_mode = #tpu.pipeline_mode<synchronous>, transform_indices = @transform_0, window_bounds = array<i64: 8, 512>}, {pipeline_mode = #tpu.pipeline_mode<synchronous>, transform_indices = @transform_1, window_bounds = array<i64: 8, 36>}, {pipeline_mode = #tpu.pipeline_mode<synchronous>, transform_indices = @transform_2, window_bounds = array<i64: 8, 1>}, {pipeline_mode = #tpu.pipeline_mode<synchronous>, transform_indices = @transform_3, window_bounds = array<i64: 8, 1>}, {pipeline_mode = #tpu.pipeline_mode<synchronous>, transform_indices = @transform_4, window_bounds = array<i64: 2, 8, 256>}]} {
    %c0 = arith.constant 0 : index
    %c0_0 = arith.constant 0 : index
    %0 = vector.load %arg1[%c0, %c0_0] : memref<8x512xf32, #tpu.memory_space<vmem>>, vector<8x512xf32>
    %1 = vector.extract_strided_slice %0 {offsets = [0, 0], sizes = [8, 384], strides = [1, 1]} : vector<8x512xf32> to vector<8x384xf32>
    %2 = vector.extract_strided_slice %1 {offsets = [0, 0], sizes = [4, 384], strides = [1, 1]} : vector<8x384xf32> to vector<4x384xf32>
    %3 = vector.extract_strided_slice %1 {offsets = [4, 0], sizes = [4, 384], strides = [1, 1]} : vector<8x384xf32> to vector<4x384xf32>
    %4 = tpu.concatenate %2, %3 in 1 : vector<4x384xf32>, vector<4x384xf32> -> vector<4x768xf32>
    %c0_1 = arith.constant 0 : index
    %c0_2 = arith.constant 0 : index
    %5 = vector.load %arg6[%c0_1, %c0_2] : memref<36x768xf32, #tpu.memory_space<vmem>>, vector<4x768xf32>
    tpu.vector_store %arg6[%c0_1, %c0_2], %4 {strides = array<i32>} : memref<36x768xf32, #tpu.memory_space<vmem>>, vector<4x768xf32>,
    %6 = vector.extract_strided_slice %0 {offsets = [0, 1], sizes = [8, 384], strides = [1, 1]} : vector<8x512xf32> to vector<8x384xf32>
    %7 = vector.extract_strided_slice %6 {offsets = [0, 0], sizes = [4, 384], strides = [1, 1]} : vector<8x384xf32> to vector<4x384xf32>
    %8 = vector.extract_strided_slice %6 {offsets = [4, 0], sizes = [4, 384], strides = [1, 1]} : vector<8x384xf32> to vector<4x384xf32>
    %9 = tpu.concatenate %7, %8 in 1 : vector<4x384xf32>, vector<4x384xf32> -> vector<4x768xf32>
    %c4 = arith.constant 4 : index
    %c0_3 = arith.constant 0 : index
    %10 = vector.load %arg6[%c4, %c0_3] : memref<36x768xf32, #tpu.memory_space<vmem>>, vector<4x768xf32>
    tpu.vector_store %arg6[%c4, %c0_3], %9 {strides = array<i32>} : memref<36x768xf32, #tpu.memory_space<vmem>>, vector<4x768xf32>,
    %11 = vector.extract_strided_slice %0 {offsets = [0, 2], sizes = [8, 384], strides = [1, 1]} : vector<8x512xf32> to vector<8x384xf32>
    %12 = vector.extract_strided_slice %11 {offsets = [0, 0], sizes = [4, 384], strides = [1, 1]} : vector<8x384xf32> to vector<4x384xf32>
    %13 = vector.extract_strided_slice %11 {offsets = [4, 0], sizes = [4, 384], strides = [1, 1]} : vector<8x384xf32> to vector<4x384xf32>
    %14 = tpu.concatenate %12, %13 in 1 : vector<4x384xf32>, vector<4x384xf32> -> vector<4x768xf32>
    %c8 = arith.constant 8 : index
    %c0_4 = arith.constant 0 : index
    %15 = vector.load %arg6[%c8, %c0_4] : memref<36x768xf32, #tpu.memory_space<vmem>>, vector<4x768xf32>
    tpu.vector_store %arg6[%c8, %c0_4], %14 {strides = array<i32>} : memref<36x768xf32, #tpu.memory_space<vmem>>, vector<4x768xf32>,
    %16 = vector.extract_strided_slice %0 {offsets = [0, 18], sizes = [8, 384], strides = [1, 1]} : vector<8x512xf32> to vector<8x384xf32>
    %17 = vector.extract_strided_slice %16 {offsets = [0, 0], sizes = [4, 384], strides = [1, 1]} : vector<8x384xf32> to vector<4x384xf32>
    %18 = vector.extract_strided_slice %16 {offsets = [4, 0], sizes = [4, 384], strides = [1, 1]} : vector<8x384xf32> to vector<4x384xf32>
    %19 = tpu.concatenate %17, %18 in 1 : vector<4x384xf32>, vector<4x384xf32> -> vector<4x768xf32>
    %c12 = arith.constant 12 : index
    %c0_5 = arith.constant 0 : index
    %20 = vector.load %arg6[%c12, %c0_5] : memref<36x768xf32, #tpu.memory_space<vmem>>, vector<4x768xf32>
    tpu.vector_store %arg6[%c12, %c0_5], %19 {strides = array<i32>} : memref<36x768xf32, #tpu.memory_space<vmem>>, vector<4x768xf32>,
    %21 = vector.extract_strided_slice %0 {offsets = [0, 19], sizes = [8, 384], strides = [1, 1]} : vector<8x512xf32> to vector<8x384xf32>
    %22 = vector.extract_strided_slice %21 {offsets = [0, 0], sizes = [4, 384], strides = [1, 1]} : vector<8x384xf32> to vector<4x384xf32>
    %23 = vector.extract_strided_slice %21 {offsets = [4, 0], sizes = [4, 384], strides = [1, 1]} : vector<8x384xf32> to vector<4x384xf32>
    %24 = tpu.concatenate %22, %23 in 1 : vector<4x384xf32>, vector<4x384xf32> -> vector<4x768xf32>
    %c16 = arith.constant 16 : index
    %c0_6 = arith.constant 0 : index
    %25 = vector.load %arg6[%c16, %c0_6] : memref<36x768xf32, #tpu.memory_space<vmem>>, vector<4x768xf32>
    tpu.vector_store %arg6[%c16, %c0_6], %24 {strides = array<i32>} : memref<36x768xf32, #tpu.memory_space<vmem>>, vector<4x768xf32>,
    %26 = vector.extract_strided_slice %0 {offsets = [0, 20], sizes = [8, 384], strides = [1, 1]} : vector<8x512xf32> to vector<8x384xf32>
    %27 = vector.extract_strided_slice %26 {offsets = [0, 0], sizes = [4, 384], strides = [1, 1]} : vector<8x384xf32> to vector<4x384xf32>
    %28 = vector.extract_strided_slice %26 {offsets = [4, 0], sizes = [4, 384], strides = [1, 1]} : vector<8x384xf32> to vector<4x384xf32>
    %29 = tpu.concatenate %27, %28 in 1 : vector<4x384xf32>, vector<4x384xf32> -> vector<4x768xf32>
    %c20 = arith.constant 20 : index
    %c0_7 = arith.constant 0 : index
    %30 = vector.load %arg6[%c20, %c0_7] : memref<36x768xf32, #tpu.memory_space<vmem>>, vector<4x768xf32>
    tpu.vector_store %arg6[%c20, %c0_7], %29 {strides = array<i32>} : memref<36x768xf32, #tpu.memory_space<vmem>>, vector<4x768xf32>,
    %31 = vector.extract_strided_slice %0 {offsets = [0, 36], sizes = [8, 384], strides = [1, 1]} : vector<8x512xf32> to vector<8x384xf32>
    %32 = vector.extract_strided_slice %31 {offsets = [0, 0], sizes = [4, 384], strides = [1, 1]} : vector<8x384xf32> to vector<4x384xf32>
    %33 = vector.extract_strided_slice %31 {offsets = [4, 0], sizes = [4, 384], strides = [1, 1]} : vector<8x384xf32> to vector<4x384xf32>
    %34 = tpu.concatenate %32, %33 in 1 : vector<4x384xf32>, vector<4x384xf32> -> vector<4x768xf32>
    %c24 = arith.constant 24 : index
    %c0_8 = arith.constant 0 : index
    %35 = vector.load %arg6[%c24, %c0_8] : memref<36x768xf32, #tpu.memory_space<vmem>>, vector<4x768xf32>
    tpu.vector_store %arg6[%c24, %c0_8], %34 {strides = array<i32>} : memref<36x768xf32, #tpu.memory_space<vmem>>, vector<4x768xf32>,
    %36 = vector.extract_strided_slice %0 {offsets = [0, 37], sizes = [8, 384], strides = [1, 1]} : vector<8x512xf32> to vector<8x384xf32>
    %37 = vector.extract_strided_slice %36 {offsets = [0, 0], sizes = [4, 384], strides = [1, 1]} : vector<8x384xf32> to vector<4x384xf32>
    %38 = vector.extract_strided_slice %36 {offsets = [4, 0], sizes = [4, 384], strides = [1, 1]} : vector<8x384xf32> to vector<4x384xf32>
    %39 = tpu.concatenate %37, %38 in 1 : vector<4x384xf32>, vector<4x384xf32> -> vector<4x768xf32>
    %c28 = arith.constant 28 : index
    %c0_9 = arith.constant 0 : index
    %40 = vector.load %arg6[%c28, %c0_9] : memref<36x768xf32, #tpu.memory_space<vmem>>, vector<4x768xf32>
    tpu.vector_store %arg6[%c28, %c0_9], %39 {strides = array<i32>} : memref<36x768xf32, #tpu.memory_space<vmem>>, vector<4x768xf32>,
    %41 = vector.extract_strided_slice %0 {offsets = [0, 38], sizes = [8, 384], strides = [1, 1]} : vector<8x512xf32> to vector<8x384xf32>
    %42 = vector.extract_strided_slice %41 {offsets = [0, 0], sizes = [4, 384], strides = [1, 1]} : vector<8x384xf32> to vector<4x384xf32>
    %43 = vector.extract_strided_slice %41 {offsets = [4, 0], sizes = [4, 384], strides = [1, 1]} : vector<8x384xf32> to vector<4x384xf32>
    %44 = tpu.concatenate %42, %43 in 1 : vector<4x384xf32>, vector<4x384xf32> -> vector<4x768xf32>
    %c32 = arith.constant 32 : index
    %c0_10 = arith.constant 0 : index
    %45 = vector.load %arg6[%c32, %c0_10] : memref<36x768xf32, #tpu.memory_space<vmem>>, vector<4x768xf32>
    tpu.vector_store %arg6[%c32, %c0_10], %44 {strides = array<i32>} : memref<36x768xf32, #tpu.memory_space<vmem>>, vector<4x768xf32>,
    %c0_11 = arith.constant 0 : index
    %c0_12 = arith.constant 0 : index
    %46 = vector.load %arg2[%c0_11, %c0_12] : memref<8x36xbf16, #tpu.memory_space<vmem>>, vector<8x36xbf16>
    %c0_13 = arith.constant 0 : index
    %c0_14 = arith.constant 0 : index
    %47 = vector.load %arg6[%c0_13, %c0_14] : memref<36x768xf32, #tpu.memory_space<vmem>>, vector<36x768xf32>
    %48 = arith.truncf %47 : vector<36x768xf32> to vector<36x768xbf16>
    %cst = arith.constant dense<0.000000e+00> : vector<8x768xf32>
    %49 = tpu.matmul %46, %48, %cst {dimension_numbers = #tpu.dot_dimension_numbers<[1], [0], [0], [1], [0, 0, 1, 1], [], []>} : vector<8x36xbf16>, vector<36x768xbf16>, vector<8x768xf32> -> vector<8x768xf32>
    %c0_15 = arith.constant 0 : index
    %c0_16 = arith.constant 0 : index
    %50 = vector.load %arg7[%c0_15, %c0_16] : memref<8x768xf32, #tpu.memory_space<vmem>>, vector<8x768xf32>
    tpu.vector_store %arg7[%c0_15, %c0_16], %49 {strides = array<i32>} : memref<8x768xf32, #tpu.memory_space<vmem>>, vector<8x768xf32>,
    %c0_17 = arith.constant 0 : index
    %c0_18 = arith.constant 0 : index
    %51 = vector.load %arg7[%c0_17, %c0_18] : memref<8x768xf32, #tpu.memory_space<vmem>>, vector<8x16xf32>
    %c0_19 = arith.constant 0 : index
    %c0_20 = arith.constant 0 : index
    %52 = vector.load %arg8[%c0_19, %c0_20] : memref<8x512xf32, #tpu.memory_space<vmem>>, vector<8x16xf32>
    tpu.vector_store %arg8[%c0_19, %c0_20], %51 {strides = array<i32>} : memref<8x512xf32, #tpu.memory_space<vmem>>, vector<8x16xf32>,
    %c0_21 = arith.constant 0 : index
    %c18 = arith.constant 18 : index
    %53 = vector.load %arg7[%c0_21, %c18] : memref<8x768xf32, #tpu.memory_space<vmem>>, vector<8x16xf32>
    %c0_22 = arith.constant 0 : index
    %c16_23 = arith.constant 16 : index
    %54 = vector.load %arg8[%c0_22, %c16_23] : memref<8x512xf32, #tpu.memory_space<vmem>>, vector<8x16xf32>
    tpu.vector_store %arg8[%c0_22, %c16_23], %53 {strides = array<i32>} : memref<8x512xf32, #tpu.memory_space<vmem>>, vector<8x16xf32>,
    %c0_24 = arith.constant 0 : index
    %c36 = arith.constant 36 : index
    %55 = vector.load %arg7[%c0_24, %c36] : memref<8x768xf32, #tpu.memory_space<vmem>>, vector<8x16xf32>
    %c0_25 = arith.constant 0 : index
    %c32_26 = arith.constant 32 : index
    %56 = vector.load %arg8[%c0_25, %c32_26] : memref<8x512xf32, #tpu.memory_space<vmem>>, vector<8x16xf32>
    tpu.vector_store %arg8[%c0_25, %c32_26], %55 {strides = array<i32>} : memref<8x512xf32, #tpu.memory_space<vmem>>, vector<8x16xf32>,
    %c0_27 = arith.constant 0 : index
    %c54 = arith.constant 54 : index
    %57 = vector.load %arg7[%c0_27, %c54] : memref<8x768xf32, #tpu.memory_space<vmem>>, vector<8x16xf32>
    %c0_28 = arith.constant 0 : index
    %c48 = arith.constant 48 : index
    %58 = vector.load %arg8[%c0_28, %c48] : memref<8x512xf32, #tpu.memory_space<vmem>>, vector<8x16xf32>
    tpu.vector_store %arg8[%c0_28, %c48], %57 {strides = array<i32>} : memref<8x512xf32, #tpu.memory_space<vmem>>, vector<8x16xf32>,
    %c0_29 = arith.constant 0 : index
    %c72 = arith.constant 72 : index
    %59 = vector.load %arg7[%c0_29, %c72] : memref<8x768xf32, #tpu.memory_space<vmem>>, vector<8x16xf32>
    %c0_30 = arith.constant 0 : index
    %c64 = arith.constant 64 : index
    %60 = vector.load %arg8[%c0_30, %c64] : memref<8x512xf32, #tpu.memory_space<vmem>>, vector<8x16xf32>
    tpu.vector_store %arg8[%c0_30, %c64], %59 {strides = array<i32>} : memref<8x512xf32, #tpu.memory_space<vmem>>, vector<8x16xf32>,
    %c0_31 = arith.constant 0 : index
    %c90 = arith.constant 90 : index
    %61 = vector.load %arg7[%c0_31, %c90] : memref<8x768xf32, #tpu.memory_space<vmem>>, vector<8x16xf32>
    %c0_32 = arith.constant 0 : index
    %c80 = arith.constant 80 : index
    %62 = vector.load %arg8[%c0_32, %c80] : memref<8x512xf32, #tpu.memory_space<vmem>>, vector<8x16xf32>
    tpu.vector_store %arg8[%c0_32, %c80], %61 {strides = array<i32>} : memref<8x512xf32, #tpu.memory_space<vmem>>, vector<8x16xf32>,
    %c0_33 = arith.constant 0 : index
    %c108 = arith.constant 108 : index
    %63 = vector.load %arg7[%c0_33, %c108] : memref<8x768xf32, #tpu.memory_space<vmem>>, vector<8x16xf32>
    %c0_34 = arith.constant 0 : index
    %c96 = arith.constant 96 : index
    %64 = vector.load %arg8[%c0_34, %c96] : memref<8x512xf32, #tpu.memory_space<vmem>>, vector<8x16xf32>
    tpu.vector_store %arg8[%c0_34, %c96], %63 {strides = array<i32>} : memref<8x512xf32, #tpu.memory_space<vmem>>, vector<8x16xf32>,
    %c0_35 = arith.constant 0 : index
    %c126 = arith.constant 126 : index
    %65 = vector.load %arg7[%c0_35, %c126] : memref<8x768xf32, #tpu.memory_space<vmem>>, vector<8x16xf32>
    %c0_36 = arith.constant 0 : index
    %c112 = arith.constant 112 : index
    %66 = vector.load %arg8[%c0_36, %c112] : memref<8x512xf32, #tpu.memory_space<vmem>>, vector<8x16xf32>
    tpu.vector_store %arg8[%c0_36, %c112], %65 {strides = array<i32>} : memref<8x512xf32, #tpu.memory_space<vmem>>, vector<8x16xf32>,
    %c0_37 = arith.constant 0 : index
    %c144 = arith.constant 144 : index
    %67 = vector.load %arg7[%c0_37, %c144] : memref<8x768xf32, #tpu.memory_space<vmem>>, vector<8x16xf32>
    %c0_38 = arith.constant 0 : index
    %c128 = arith.constant 128 : index
    %68 = vector.load %arg8[%c0_38, %c128] : memref<8x512xf32, #tpu.memory_space<vmem>>, vector<8x16xf32>
    tpu.vector_store %arg8[%c0_38, %c128], %67 {strides = array<i32>} : memref<8x512xf32, #tpu.memory_space<vmem>>, vector<8x16xf32>,
    %c0_39 = arith.constant 0 : index
    %c162 = arith.constant 162 : index
    %69 = vector.load %arg7[%c0_39, %c162] : memref<8x768xf32, #tpu.memory_space<vmem>>, vector<8x16xf32>
    %c0_40 = arith.constant 0 : index
    %c144_41 = arith.constant 144 : index
    %70 = vector.load %arg8[%c0_40, %c144_41] : memref<8x512xf32, #tpu.memory_space<vmem>>, vector<8x16xf32>
    tpu.vector_store %arg8[%c0_40, %c144_41], %69 {strides = array<i32>} : memref<8x512xf32, #tpu.memory_space<vmem>>, vector<8x16xf32>,
    %c0_42 = arith.constant 0 : index
    %c180 = arith.constant 180 : index
    %71 = vector.load %arg7[%c0_42, %c180] : memref<8x768xf32, #tpu.memory_space<vmem>>, vector<8x16xf32>
    %c0_43 = arith.constant 0 : index
    %c160 = arith.constant 160 : index
    %72 = vector.load %arg8[%c0_43, %c160] : memref<8x512xf32, #tpu.memory_space<vmem>>, vector<8x16xf32>
    tpu.vector_store %arg8[%c0_43, %c160], %71 {strides = array<i32>} : memref<8x512xf32, #tpu.memory_space<vmem>>, vector<8x16xf32>,
    %c0_44 = arith.constant 0 : index
    %c198 = arith.constant 198 : index
    %73 = vector.load %arg7[%c0_44, %c198] : memref<8x768xf32, #tpu.memory_space<vmem>>, vector<8x16xf32>
    %c0_45 = arith.constant 0 : index
    %c176 = arith.constant 176 : index
    %74 = vector.load %arg8[%c0_45, %c176] : memref<8x512xf32, #tpu.memory_space<vmem>>, vector<8x16xf32>
    tpu.vector_store %arg8[%c0_45, %c176], %73 {strides = array<i32>} : memref<8x512xf32, #tpu.memory_space<vmem>>, vector<8x16xf32>,
    %c0_46 = arith.constant 0 : index
    %c216 = arith.constant 216 : index
    %75 = vector.load %arg7[%c0_46, %c216] : memref<8x768xf32, #tpu.memory_space<vmem>>, vector<8x16xf32>
    %c0_47 = arith.constant 0 : index
    %c192 = arith.constant 192 : index
    %76 = vector.load %arg8[%c0_47, %c192] : memref<8x512xf32, #tpu.memory_space<vmem>>, vector<8x16xf32>
    tpu.vector_store %arg8[%c0_47, %c192], %75 {strides = array<i32>} : memref<8x512xf32, #tpu.memory_space<vmem>>, vector<8x16xf32>,
    %c0_48 = arith.constant 0 : index
    %c234 = arith.constant 234 : index
    %77 = vector.load %arg7[%c0_48, %c234] : memref<8x768xf32, #tpu.memory_space<vmem>>, vector<8x16xf32>
    %c0_49 = arith.constant 0 : index
    %c208 = arith.constant 208 : index
    %78 = vector.load %arg8[%c0_49, %c208] : memref<8x512xf32, #tpu.memory_space<vmem>>, vector<8x16xf32>
    tpu.vector_store %arg8[%c0_49, %c208], %77 {strides = array<i32>} : memref<8x512xf32, #tpu.memory_space<vmem>>, vector<8x16xf32>,
    %c0_50 = arith.constant 0 : index
    %c252 = arith.constant 252 : index
    %79 = vector.load %arg7[%c0_50, %c252] : memref<8x768xf32, #tpu.memory_space<vmem>>, vector<8x16xf32>
    %c0_51 = arith.constant 0 : index
    %c224 = arith.constant 224 : index
    %80 = vector.load %arg8[%c0_51, %c224] : memref<8x512xf32, #tpu.memory_space<vmem>>, vector<8x16xf32>
    tpu.vector_store %arg8[%c0_51, %c224], %79 {strides = array<i32>} : memref<8x512xf32, #tpu.memory_space<vmem>>, vector<8x16xf32>,
    %c0_52 = arith.constant 0 : index
    %c270 = arith.constant 270 : index
    %81 = vector.load %arg7[%c0_52, %c270] : memref<8x768xf32, #tpu.memory_space<vmem>>, vector<8x16xf32>
    %c0_53 = arith.constant 0 : index
    %c240 = arith.constant 240 : index
    %82 = vector.load %arg8[%c0_53, %c240] : memref<8x512xf32, #tpu.memory_space<vmem>>, vector<8x16xf32>
    tpu.vector_store %arg8[%c0_53, %c240], %81 {strides = array<i32>} : memref<8x512xf32, #tpu.memory_space<vmem>>, vector<8x16xf32>,
    %c0_54 = arith.constant 0 : index
    %c384 = arith.constant 384 : index
    %83 = vector.load %arg7[%c0_54, %c384] : memref<8x768xf32, #tpu.memory_space<vmem>>, vector<8x16xf32>
    %c0_55 = arith.constant 0 : index
    %c256 = arith.constant 256 : index
    %84 = vector.load %arg8[%c0_55, %c256] : memref<8x512xf32, #tpu.memory_space<vmem>>, vector<8x16xf32>
    tpu.vector_store %arg8[%c0_55, %c256], %83 {strides = array<i32>} : memref<8x512xf32, #tpu.memory_space<vmem>>, vector<8x16xf32>,
    %c0_56 = arith.constant 0 : index
    %c402 = arith.constant 402 : index
    %85 = vector.load %arg7[%c0_56, %c402] : memref<8x768xf32, #tpu.memory_space<vmem>>, vector<8x16xf32>
    %c0_57 = arith.constant 0 : index
    %c272 = arith.constant 272 : index
    %86 = vector.load %arg8[%c0_57, %c272] : memref<8x512xf32, #tpu.memory_space<vmem>>, vector<8x16xf32>
    tpu.vector_store %arg8[%c0_57, %c272], %85 {strides = array<i32>} : memref<8x512xf32, #tpu.memory_space<vmem>>, vector<8x16xf32>,
    %c0_58 = arith.constant 0 : index
    %c420 = arith.constant 420 : index
    %87 = vector.load %arg7[%c0_58, %c420] : memref<8x768xf32, #tpu.memory_space<vmem>>, vector<8x16xf32>
    %c0_59 = arith.constant 0 : index
    %c288 = arith.constant 288 : index
    %88 = vector.load %arg8[%c0_59, %c288] : memref<8x512xf32, #tpu.memory_space<vmem>>, vector<8x16xf32>
    tpu.vector_store %arg8[%c0_59, %c288], %87 {strides = array<i32>} : memref<8x512xf32, #tpu.memory_space<vmem>>, vector<8x16xf32>,
    %c0_60 = arith.constant 0 : index
    %c438 = arith.constant 438 : index
    %89 = vector.load %arg7[%c0_60, %c438] : memref<8x768xf32, #tpu.memory_space<vmem>>, vector<8x16xf32>
    %c0_61 = arith.constant 0 : index
    %c304 = arith.constant 304 : index
    %90 = vector.load %arg8[%c0_61, %c304] : memref<8x512xf32, #tpu.memory_space<vmem>>, vector<8x16xf32>
    tpu.vector_store %arg8[%c0_61, %c304], %89 {strides = array<i32>} : memref<8x512xf32, #tpu.memory_space<vmem>>, vector<8x16xf32>,
    %c0_62 = arith.constant 0 : index
    %c456 = arith.constant 456 : index
    %91 = vector.load %arg7[%c0_62, %c456] : memref<8x768xf32, #tpu.memory_space<vmem>>, vector<8x16xf32>
    %c0_63 = arith.constant 0 : index
    %c320 = arith.constant 320 : index
    %92 = vector.load %arg8[%c0_63, %c320] : memref<8x512xf32, #tpu.memory_space<vmem>>, vector<8x16xf32>
    tpu.vector_store %arg8[%c0_63, %c320], %91 {strides = array<i32>} : memref<8x512xf32, #tpu.memory_space<vmem>>, vector<8x16xf32>,
    %c0_64 = arith.constant 0 : index
    %c474 = arith.constant 474 : index
    %93 = vector.load %arg7[%c0_64, %c474] : memref<8x768xf32, #tpu.memory_space<vmem>>, vector<8x16xf32>
    %c0_65 = arith.constant 0 : index
    %c336 = arith.constant 336 : index
    %94 = vector.load %arg8[%c0_65, %c336] : memref<8x512xf32, #tpu.memory_space<vmem>>, vector<8x16xf32>
    tpu.vector_store %arg8[%c0_65, %c336], %93 {strides = array<i32>} : memref<8x512xf32, #tpu.memory_space<vmem>>, vector<8x16xf32>,
    %c0_66 = arith.constant 0 : index
    %c492 = arith.constant 492 : index
    %95 = vector.load %arg7[%c0_66, %c492] : memref<8x768xf32, #tpu.memory_space<vmem>>, vector<8x16xf32>
    %c0_67 = arith.constant 0 : index
    %c352 = arith.constant 352 : index
    %96 = vector.load %arg8[%c0_67, %c352] : memref<8x512xf32, #tpu.memory_space<vmem>>, vector<8x16xf32>
    tpu.vector_store %arg8[%c0_67, %c352], %95 {strides = array<i32>} : memref<8x512xf32, #tpu.memory_space<vmem>>, vector<8x16xf32>,
    %c0_68 = arith.constant 0 : index
    %c510 = arith.constant 510 : index
    %97 = vector.load %arg7[%c0_68, %c510] : memref<8x768xf32, #tpu.memory_space<vmem>>, vector<8x16xf32>
    %c0_69 = arith.constant 0 : index
    %c368 = arith.constant 368 : index
    %98 = vector.load %arg8[%c0_69, %c368] : memref<8x512xf32, #tpu.memory_space<vmem>>, vector<8x16xf32>
    tpu.vector_store %arg8[%c0_69, %c368], %97 {strides = array<i32>} : memref<8x512xf32, #tpu.memory_space<vmem>>, vector<8x16xf32>,
    %c0_70 = arith.constant 0 : index
    %c528 = arith.constant 528 : index
    %99 = vector.load %arg7[%c0_70, %c528] : memref<8x768xf32, #tpu.memory_space<vmem>>, vector<8x16xf32>
    %c0_71 = arith.constant 0 : index
    %c384_72 = arith.constant 384 : index
    %100 = vector.load %arg8[%c0_71, %c384_72] : memref<8x512xf32, #tpu.memory_space<vmem>>, vector<8x16xf32>
    tpu.vector_store %arg8[%c0_71, %c384_72], %99 {strides = array<i32>} : memref<8x512xf32, #tpu.memory_space<vmem>>, vector<8x16xf32>,
    %c0_73 = arith.constant 0 : index
    %c546 = arith.constant 546 : index
    %101 = vector.load %arg7[%c0_73, %c546] : memref<8x768xf32, #tpu.memory_space<vmem>>, vector<8x16xf32>
    %c0_74 = arith.constant 0 : index
    %c400 = arith.constant 400 : index
    %102 = vector.load %arg8[%c0_74, %c400] : memref<8x512xf32, #tpu.memory_space<vmem>>, vector<8x16xf32>
    tpu.vector_store %arg8[%c0_74, %c400], %101 {strides = array<i32>} : memref<8x512xf32, #tpu.memory_space<vmem>>, vector<8x16xf32>,
    %c0_75 = arith.constant 0 : index
    %c564 = arith.constant 564 : index
    %103 = vector.load %arg7[%c0_75, %c564] : memref<8x768xf32, #tpu.memory_space<vmem>>, vector<8x16xf32>
    %c0_76 = arith.constant 0 : index
    %c416 = arith.constant 416 : index
    %104 = vector.load %arg8[%c0_76, %c416] : memref<8x512xf32, #tpu.memory_space<vmem>>, vector<8x16xf32>
    tpu.vector_store %arg8[%c0_76, %c416], %103 {strides = array<i32>} : memref<8x512xf32, #tpu.memory_space<vmem>>, vector<8x16xf32>,
    %c0_77 = arith.constant 0 : index
    %c582 = arith.constant 582 : index
    %105 = vector.load %arg7[%c0_77, %c582] : memref<8x768xf32, #tpu.memory_space<vmem>>, vector<8x16xf32>
    %c0_78 = arith.constant 0 : index
    %c432 = arith.constant 432 : index
    %106 = vector.load %arg8[%c0_78, %c432] : memref<8x512xf32, #tpu.memory_space<vmem>>, vector<8x16xf32>
    tpu.vector_store %arg8[%c0_78, %c432], %105 {strides = array<i32>} : memref<8x512xf32, #tpu.memory_space<vmem>>, vector<8x16xf32>,
    %c0_79 = arith.constant 0 : index
    %c600 = arith.constant 600 : index
    %107 = vector.load %arg7[%c0_79, %c600] : memref<8x768xf32, #tpu.memory_space<vmem>>, vector<8x16xf32>
    %c0_80 = arith.constant 0 : index
    %c448 = arith.constant 448 : index
    %108 = vector.load %arg8[%c0_80, %c448] : memref<8x512xf32, #tpu.memory_space<vmem>>, vector<8x16xf32>
    tpu.vector_store %arg8[%c0_80, %c448], %107 {strides = array<i32>} : memref<8x512xf32, #tpu.memory_space<vmem>>, vector<8x16xf32>,
    %c0_81 = arith.constant 0 : index
    %c618 = arith.constant 618 : index
    %109 = vector.load %arg7[%c0_81, %c618] : memref<8x768xf32, #tpu.memory_space<vmem>>, vector<8x16xf32>
    %c0_82 = arith.constant 0 : index
    %c464 = arith.constant 464 : index
    %110 = vector.load %arg8[%c0_82, %c464] : memref<8x512xf32, #tpu.memory_space<vmem>>, vector<8x16xf32>
    tpu.vector_store %arg8[%c0_82, %c464], %109 {strides = array<i32>} : memref<8x512xf32, #tpu.memory_space<vmem>>, vector<8x16xf32>,
    %c0_83 = arith.constant 0 : index
    %c636 = arith.constant 636 : index
    %111 = vector.load %arg7[%c0_83, %c636] : memref<8x768xf32, #tpu.memory_space<vmem>>, vector<8x16xf32>
    %c0_84 = arith.constant 0 : index
    %c480 = arith.constant 480 : index
    %112 = vector.load %arg8[%c0_84, %c480] : memref<8x512xf32, #tpu.memory_space<vmem>>, vector<8x16xf32>
    tpu.vector_store %arg8[%c0_84, %c480], %111 {strides = array<i32>} : memref<8x512xf32, #tpu.memory_space<vmem>>, vector<8x16xf32>,
    %c0_85 = arith.constant 0 : index
    %c654 = arith.constant 654 : index
    %113 = vector.load %arg7[%c0_85, %c654] : memref<8x768xf32, #tpu.memory_space<vmem>>, vector<8x16xf32>
    %c0_86 = arith.constant 0 : index
    %c496 = arith.constant 496 : index
    %114 = vector.load %arg8[%c0_86, %c496] : memref<8x512xf32, #tpu.memory_space<vmem>>, vector<8x16xf32>
    tpu.vector_store %arg8[%c0_86, %c496], %113 {strides = array<i32>} : memref<8x512xf32, #tpu.memory_space<vmem>>, vector<8x16xf32>,
    %c0_87 = arith.constant 0 : index
    %c0_88 = arith.constant 0 : index
    %115 = vector.load %arg8[%c0_87, %c0_88] : memref<8x512xf32, #tpu.memory_space<vmem>>, vector<8x512xf32>
    %cst_89 = arith.constant dense<0.000000e+00> : vector<8xf32>
    %116 = vector.multi_reduction <add>, %115, %cst_89 [1] : vector<8x512xf32> to vector<8xf32>
    %117 = vector.shape_cast %116 : vector<8xf32> to vector<8x1xf32>
    %cst_90 = arith.constant 0.001953125 : f32
    %118 = vector.broadcast %cst_90 : f32 to vector<8x1xf32>
    %119 = arith.mulf %117, %118 : vector<8x1xf32>
    %120 = vector.broadcast %119 : vector<8x1xf32> to vector<8x512xf32>
    %121 = arith.subf %115, %120 : vector<8x512xf32>
    %122 = arith.mulf %121, %121 : vector<8x512xf32>
    %cst_91 = arith.constant dense<0.000000e+00> : vector<8xf32>
    %123 = vector.multi_reduction <add>, %122, %cst_91 [1] : vector<8x512xf32> to vector<8xf32>
    %124 = vector.shape_cast %123 : vector<8xf32> to vector<8x1xf32>
    %cst_92 = arith.constant 0.001953125 : f32
    %125 = vector.broadcast %cst_92 : f32 to vector<8x1xf32>
    %126 = arith.mulf %124, %125 : vector<8x1xf32>
    %c0_93 = arith.constant 0 : index
    %c0_94 = arith.constant 0 : index
    %127 = vector.load %arg3[%c0_93, %c0_94] : memref<8x1xf32, #tpu.memory_space<vmem>>, vector<8x1xf32>
    %cst_95 = arith.constant 9.99999974E-6 : f32
    %128 = vector.broadcast %cst_95 : f32 to vector<8x1xf32>
    %129 = arith.addf %126, %128 : vector<8x1xf32>
    %130 = math.rsqrt %129 : vector<8x1xf32>
    %131 = arith.mulf %127, %130 : vector<8x1xf32>
    %132 = vector.broadcast %131 : vector<8x1xf32> to vector<8x512xf32>
    %133 = arith.mulf %121, %132 : vector<8x512xf32>
    %c0_96 = arith.constant 0 : index
    %c0_97 = arith.constant 0 : index
    %134 = vector.load %arg4[%c0_96, %c0_97] : memref<8x1xf32, #tpu.memory_space<vmem>>, vector<8x1xf32>
    %135 = vector.broadcast %134 : vector<8x1xf32> to vector<8x512xf32>
    %136 = arith.addf %133, %135 : vector<8x512xf32>
    %cst_98 = arith.constant 0.000000e+00 : f32
    %137 = vector.broadcast %cst_98 : f32 to vector<8x512xf32>
    %138 = arith.maximumf %136, %137 : vector<8x512xf32>
    %139 = vector.extract_strided_slice %138 {offsets = [0, 0], sizes = [8, 256], strides = [1, 1]} : vector<8x512xf32> to vector<8x256xf32>
    %c0_99 = arith.constant 0 : index
    %c0_100 = arith.constant 0 : index
    %c0_101 = arith.constant 0 : index
    %140 = vector.load %arg5[%c0_99, %c0_100, %c0_101] : memref<2x8x256xf32, #tpu.memory_space<vmem>>, vector<1x8x256xf32>
    %141 = vector.shape_cast %140 : vector<1x8x256xf32> to vector<8x256xf32>
    %142 = vector.shape_cast %139 : vector<8x256xf32> to vector<1x8x256xf32>
    tpu.vector_store %arg5[%c0_99, %c0_100, %c0_101], %142 {strides = array<i32>} : memref<2x8x256xf32, #tpu.memory_space<vmem>>, vector<1x8x256xf32>,
    %143 = vector.extract_strided_slice %138 {offsets = [0, 256], sizes = [8, 256], strides = [1, 1]} : vector<8x512xf32> to vector<8x256xf32>
    %c1 = arith.constant 1 : index
    %c0_102 = arith.constant 0 : index
    %c0_103 = arith.constant 0 : index
    %144 = vector.load %arg5[%c1, %c0_102, %c0_103] : memref<2x8x256xf32, #tpu.memory_space<vmem>>, vector<1x8x256xf32>
    %145 = vector.shape_cast %144 : vector<1x8x256xf32> to vector<8x256xf32>
    %146 = vector.shape_cast %143 : vector<8x256xf32> to vector<1x8x256xf32>
    tpu.vector_store %arg5[%c1, %c0_102, %c0_103], %146 {strides = array<i32>} : memref<2x8x256xf32, #tpu.memory_space<vmem>>, vector<1x8x256xf32>,
    return
  }
  func.func @transform_0(%arg0: i32) -> (i32, i32) {
    %c0_i32 = arith.constant 0 : i32
    %c0_i32_0 = arith.constant 0 : i32
    %c0_i32_1 = arith.constant 0 : i32
    return %c0_i32, %c0_i32_0 : i32, i32
  }
  func.func @transform_1(%arg0: i32) -> (i32, i32) {
    %c0_i32 = arith.constant 0 : i32
    %c0_i32_0 = arith.constant 0 : i32
    %c0_i32_1 = arith.constant 0 : i32
    return %c0_i32, %c0_i32_0 : i32, i32
  }
  func.func @transform_2(%arg0: i32) -> (i32, i32) {
    %c0_i32 = arith.constant 0 : i32
    %c0_i32_0 = arith.constant 0 : i32
    %c0_i32_1 = arith.constant 0 : i32
    return %c0_i32, %c0_i32_0 : i32, i32
  }
  func.func @transform_3(%arg0: i32) -> (i32, i32) {
    %c0_i32 = arith.constant 0 : i32
    %c0_i32_0 = arith.constant 0 : i32
    %c0_i32_1 = arith.constant 0 : i32
    return %c0_i32, %c0_i32_0 : i32, i32
  }
  func.func @transform_4(%arg0: i32) -> (i32, i32, i32) {
    %c0_i32 = arith.constant 0 : i32
    %c0_i32_0 = arith.constant 0 : i32
    %c0_i32_1 = arith.constant 0 : i32
    %c0_i32_2 = arith.constant 0 : i32
    return %c0_i32, %c0_i32_0, %c0_i32_1 : i32, i32, i32
  }
}

</mosaic_0001>

<llo_original>
// kernel: tpu_custom_call.1
$region0: #{tpu_custom_call.1}
  #allocation0 [shape = 'u32[]', space=smem, size = 0x4, offset = 0x4, fixed_abs, tag = 'smem constant byte address 0x4 - core index']
  #allocation1 [shape = 'u32[72,128]{1,0:T(1,128)}', space=vmem, size = 0x9000, scoped, tag = 'internal scratch']
  #allocation2 [shape = 'f32[36,768]{1,0:T(8,128)}', space=vmem, size = 0x1e000, scoped, tag = 'scratch operand']
  #allocation3 [shape = 'f32[8,768]{1,0:T(8,128)}', space=vmem, size = 0x6000, scoped, tag = 'scratch operand']
  #allocation4 [shape = 'f32[8,512]{1,0:T(8,128)}', space=vmem, size = 0x4000, scoped, tag = 'scratch operand']
  %s0 = inlined_call_operand.hbm [shape: f32[8,512], index: 0, kind: input, shape index: {}]
  %s1 = inlined_call_operand.vmem [shape: bf16[8,36], index: 1, kind: input, shape index: {}]
  %s2 = inlined_call_operand.vmem [shape: f32[8,1], index: 2, kind: input, shape index: {}]
  %s3 = inlined_call_operand.vmem [shape: f32[8,1], index: 3, kind: input, shape index: {}]
  %s4 = inlined_call_operand.hbm [shape: f32[2,8,256], index: 4, kind: output, shape index: {}]
  %s5 = sld [smem:[#allocation0]]
  $region30: #{tpu_custom_call.1} parent=0
    _
  %s7 = ssub.s32 1, %s5
  %s8 = scalar_select 0, %s7, %s5
  $region1: #{tpu_custom_call.1} parent=0
    #allocation5 [shape = 'u8[16384]{0}', space=vmem, size = 0x4000, scoped, tag = 'input window, operand 0, single buffered']
    #allocation6 [shape = 's32[1]{0}', space=sflag, size = 0x4, scoped, tag = 'scoped memory for tpu_custom_call.1']
    #allocation7 [shape = 's32[1]{0}', space=sflag, size = 0x4, scoped, tag = 'scoped memory for tpu_custom_call.1']
    #allocation8 [shape = 'u8[16384]{0}', space=vmem, size = 0x4000, scoped, tag = 'output window, operand 0, single buffered']
    %9 = vsyncpa [#allocation6], 0
    %10 = vsyncpa [#allocation7], 0
    // Predicated region
    $region2: #{tpu_custom_call.1} parent=1 // pred_check
      _
    $region3: #{tpu_custom_call.1} parent=1 // pred_check_branch
      %12 = sbr.rel (0) target = $region5
    $region4: #{tpu_custom_call.1} parent=1 // pred_region
      %14 = vsyncadd [#allocation6], 0
      %s16 = sshll.u32 %s0, 4
      %s17 = int_to_ptr.hbm [resolvable:$true] %s16
      %s18 = sshll.u32 [#allocation5], 4
      %s19 = int_to_ptr.vmem [resolvable:$true] %s18
      %21 = dma.hbm_to_vmem [thread:$0]  %s17, 512, %s19, [#allocation6]
    $region5: #{tpu_custom_call.1} parent=1 // pred_fallthru
      _
    // Predicated region
    $region6: #{tpu_custom_call.1} parent=1 // pred_check
      _
    $region7: #{tpu_custom_call.1} parent=1 // pred_check_branch
      %23 = sbr.rel (0) target = $region9
    $region8: #{tpu_custom_call.1} parent=1 // pred_region
      _
    $region9: #{tpu_custom_call.1} parent=1 // pred_fallthru
      _
    // Predicated region
    $region10: #{tpu_custom_call.1} parent=1 // pred_check
      _
    $region11: #{tpu_custom_call.1} parent=1 // pred_check_branch
      %25 = sbr.rel (0) target = $region13
    $region12: #{tpu_custom_call.1} parent=1 // pred_region
      _
    $region13: #{tpu_custom_call.1} parent=1 // pred_fallthru
      _
    // Predicated region
    $region14: #{tpu_custom_call.1} parent=1 // pred_check
      _
    $region15: #{tpu_custom_call.1} parent=1 // pred_check_branch
      %27 = sbr.rel (0) target = $region17
    $region16: #{tpu_custom_call.1} parent=1 // pred_region
      _
    $region17: #{tpu_custom_call.1} parent=1 // pred_fallthru
      _
    // Predicated region
    $region18: #{tpu_custom_call.1} parent=1 // pred_check
      _
    $region19: #{tpu_custom_call.1} parent=1 // pred_check_branch
      %29 = sbr.rel (0) target = $region21
    $region20: #{tpu_custom_call.1} parent=1 // pred_region
      %31 = dma.done [#allocation6], 512
    $region21: #{tpu_custom_call.1} parent=1 // pred_fallthru
      _
    %v33 = vld [vmem:[#allocation5] sm:$0xff]
    %v34 = vld [vmem:[#allocation5 + $0x8] sm:$0xff]
    %v35 = vld [vmem:[#allocation5 + $0x10] sm:$0xff]
    %v36 = vld [vmem:[#allocation5 + $0x18] sm:$0xff]
    %v40 = vrot.slane %v33, 4
    %v41 = vrot.slane %v34, 4
    %v42 = vrot.slane %v35, 4
    %46 = vst [vmem:[#allocation2] sm:$0xf] %v33
    %47 = vst [vmem:[#allocation2 + $0x8] sm:$0xf] %v34
    %48 = vst [vmem:[#allocation2 + $0x10] sm:$0xf] %v35
    %49 = vst [vmem:[#allocation2 + $0x18] sm:$0xf] %v40
    %50 = vst [vmem:[#allocation2 + $0x20] sm:$0xf] %v41
    %51 = vst [vmem:[#allocation2 + $0x28] sm:$0xf] %v42
    %53 = vrot.lane.b32.xlu0 %v33, 127
    %v54 = vpop.permute.xlu0 %53
    %55 = vrot.lane.b32.xlu0 %v34, 127
    %v56 = vpop.permute.xlu0 %55
    %57 = vrot.lane.b32.xlu0 %v35, 127
    %v58 = vpop.permute.xlu0 %57
    %59 = vrot.lane.b32.xlu0 %v36, 127
    %v60 = vpop.permute.xlu0 %59
    %vm61 = vcmask 1039360
    %v62 = vsel %vm61, %v54, %v56
    %v63 = vsel %vm61, %v56, %v58
    %v64 = vsel %vm61, %v58, %v60
    %v65 = vrot.slane %v36, 4
    %66 = vrot.lane.b32.xlu0 %v40, 127
    %v67 = vpop.permute.xlu0 %66
    %68 = vrot.lane.b32.xlu0 %v41, 127
    %v69 = vpop.permute.xlu0 %68
    %70 = vrot.lane.b32.xlu0 %v42, 127
    %v71 = vpop.permute.xlu0 %70
    %72 = vrot.lane.b32.xlu0 %v65, 127
    %v73 = vpop.permute.xlu0 %72
    %v74 = vsel %vm61, %v67, %v69
    %v75 = vsel %vm61, %v69, %v71
    %v76 = vsel %vm61, %v71, %v73
    %v77 = vrot.slane %v62, 4
    %v78 = vrot.slane %v63, 4
    %v79 = vrot.slane %v64, 4
    %v80 = vrot.slane %v74, 4
    %v81 = vrot.slane %v75, 4
    %v82 = vrot.slane %v76, 4
    %89 = vst [vmem:[#allocation2] sm:$0xf0] %v77
    %90 = vst [vmem:[#allocation2 + $0x8] sm:$0xf0] %v78
    %91 = vst [vmem:[#allocation2 + $0x10] sm:$0xf0] %v79
    %92 = vst [vmem:[#allocation2 + $0x18] sm:$0xf0] %v80
    %93 = vst [vmem:[#allocation2 + $0x20] sm:$0xf0] %v81
    %94 = vst [vmem:[#allocation2 + $0x28] sm:$0xf0] %v82
    %95 = vrot.lane.b32.xlu0 %v33, 126
    %v96 = vpop.permute.xlu0 %95
    %97 = vrot.lane.b32.xlu0 %v34, 126
    %v98 = vpop.permute.xlu0 %97
    %99 = vrot.lane.b32.xlu0 %v35, 126
    %v100 = vpop.permute.xlu0 %99
    %101 = vrot.lane.b32.xlu0 %v36, 126
    %v102 = vpop.permute.xlu0 %101
    %vm103 = vcmask 1031168
    %v104 = vsel %vm103, %v96, %v98
    %v105 = vsel %vm103, %v98, %v100
    %v106 = vsel %vm103, %v100, %v102
    %110 = vrot.lane.b32.xlu0 %v40, 126
    %v111 = vpop.permute.xlu0 %110
    %112 = vrot.lane.b32.xlu0 %v41, 126
    %v113 = vpop.permute.xlu0 %112
    %114 = vrot.lane.b32.xlu0 %v42, 126
    %v115 = vpop.permute.xlu0 %114
    %116 = vrot.lane.b32.xlu0 %v65, 126
    %v117 = vpop.permute.xlu0 %116
    %v118 = vsel %vm103, %v111, %v113
    %v119 = vsel %vm103, %v113, %v115
    %v120 = vsel %vm103, %v115, %v117
    %124 = vst [vmem:[#allocation2 + $0x30] sm:$0xf] %v104
    %125 = vst [vmem:[#allocation2 + $0x38] sm:$0xf] %v105
    %126 = vst [vmem:[#allocation2 + $0x40] sm:$0xf] %v106
    %127 = vst [vmem:[#allocation2 + $0x48] sm:$0xf] %v118
    %128 = vst [vmem:[#allocation2 + $0x50] sm:$0xf] %v119
    %129 = vst [vmem:[#allocation2 + $0x58] sm:$0xf] %v120
    %130 = vrot.lane.b32.xlu0 %v33, 110
    %v131 = vpop.permute.xlu0 %130
    %132 = vrot.lane.b32.xlu0 %v34, 110
    %v133 = vpop.permute.xlu0 %132
    %134 = vrot.lane.b32.xlu0 %v35, 110
    %v135 = vpop.permute.xlu0 %134
    %136 = vrot.lane.b32.xlu0 %v36, 110
    %v137 = vpop.permute.xlu0 %136
    %vm138 = vcmask 900096
    %v139 = vsel %vm138, %v131, %v133
    %v140 = vsel %vm138, %v133, %v135
    %v141 = vsel %vm138, %v135, %v137
    %142 = vrot.lane.b32.xlu0 %v40, 110
    %v143 = vpop.permute.xlu0 %142
    %144 = vrot.lane.b32.xlu0 %v41, 110
    %v145 = vpop.permute.xlu0 %144
    %146 = vrot.lane.b32.xlu0 %v42, 110
    %v147 = vpop.permute.xlu0 %146
    %148 = vrot.lane.b32.xlu0 %v65, 110
    %v149 = vpop.permute.xlu0 %148
    %v150 = vsel %vm138, %v143, %v145
    %v151 = vsel %vm138, %v145, %v147
    %v152 = vsel %vm138, %v147, %v149
    %v153 = vrot.slane %v139, 4
    %v154 = vrot.slane %v140, 4
    %v155 = vrot.slane %v141, 4
    %v156 = vrot.slane %v150, 4
    %v157 = vrot.slane %v151, 4
    %v158 = vrot.slane %v152, 4
    %165 = vst [vmem:[#allocation2 + $0x30] sm:$0xf0] %v153
    %166 = vst [vmem:[#allocation2 + $0x38] sm:$0xf0] %v154
    %167 = vst [vmem:[#allocation2 + $0x40] sm:$0xf0] %v155
    %168 = vst [vmem:[#allocation2 + $0x48] sm:$0xf0] %v156
    %169 = vst [vmem:[#allocation2 + $0x50] sm:$0xf0] %v157
    %170 = vst [vmem:[#allocation2 + $0x58] sm:$0xf0] %v158
    %171 = vrot.lane.b32.xlu0 %v33, 109
    %v172 = vpop.permute.xlu0 %171
    %173 = vrot.lane.b32.xlu0 %v34, 109
    %v174 = vpop.permute.xlu0 %173
    %175 = vrot.lane.b32.xlu0 %v35, 109
    %v176 = vpop.permute.xlu0 %175
    %177 = vrot.lane.b32.xlu0 %v36, 109
    %v178 = vpop.permute.xlu0 %177
    %vm179 = vcmask 891904
    %v180 = vsel %vm179, %v172, %v174
    %v181 = vsel %vm179, %v174, %v176
    %v182 = vsel %vm179, %v176, %v178
    %186 = vrot.lane.b32.xlu0 %v40, 109
    %v187 = vpop.permute.xlu0 %186
    %188 = vrot.lane.b32.xlu0 %v41, 109
    %v189 = vpop.permute.xlu0 %188
    %190 = vrot.lane.b32.xlu0 %v42, 109
    %v191 = vpop.permute.xlu0 %190
    %192 = vrot.lane.b32.xlu0 %v65, 109
    %v193 = vpop.permute.xlu0 %192
    %v194 = vsel %vm179, %v187, %v189
    %v195 = vsel %vm179, %v189, %v191
    %v196 = vsel %vm179, %v191, %v193
    %200 = vst [vmem:[#allocation2 + $0x60] sm:$0xf] %v180
    %201 = vst [vmem:[#allocation2 + $0x68] sm:$0xf] %v181
    %202 = vst [vmem:[#allocation2 + $0x70] sm:$0xf] %v182
    %203 = vst [vmem:[#allocation2 + $0x78] sm:$0xf] %v194
    %204 = vst [vmem:[#allocation2 + $0x80] sm:$0xf] %v195
    %205 = vst [vmem:[#allocation2 + $0x88] sm:$0xf] %v196
    %206 = vrot.lane.b32.xlu0 %v33, 108
    %v207 = vpop.permute.xlu0 %206
    %208 = vrot.lane.b32.xlu0 %v34, 108
    %v209 = vpop.permute.xlu0 %208
    %210 = vrot.lane.b32.xlu0 %v35, 108
    %v211 = vpop.permute.xlu0 %210
    %212 = vrot.lane.b32.xlu0 %v36, 108
    %v213 = vpop.permute.xlu0 %212
    %vm214 = vcmask 883712
    %v215 = vsel %vm214, %v207, %v209
    %v216 = vsel %vm214, %v209, %v211
    %v217 = vsel %vm214, %v211, %v213
    %218 = vrot.lane.b32.xlu0 %v40, 108
    %v219 = vpop.permute.xlu0 %218
    %220 = vrot.lane.b32.xlu0 %v41, 108
    %v221 = vpop.permute.xlu0 %220
    %222 = vrot.lane.b32.xlu0 %v42, 108
    %v223 = vpop.permute.xlu0 %222
    %224 = vrot.lane.b32.xlu0 %v65, 108
    %v225 = vpop.permute.xlu0 %224
    %v226 = vsel %vm214, %v219, %v221
    %v227 = vsel %vm214, %v221, %v223
    %v228 = vsel %vm214, %v223, %v225
    %v229 = vrot.slane %v215, 4
    %v230 = vrot.slane %v216, 4
    %v231 = vrot.slane %v217, 4
    %v232 = vrot.slane %v226, 4
    %v233 = vrot.slane %v227, 4
    %v234 = vrot.slane %v228, 4
    %241 = vst [vmem:[#allocation2 + $0x60] sm:$0xf0] %v229
    %242 = vst [vmem:[#allocation2 + $0x68] sm:$0xf0] %v230
    %243 = vst [vmem:[#allocation2 + $0x70] sm:$0xf0] %v231
    %244 = vst [vmem:[#allocation2 + $0x78] sm:$0xf0] %v232
    %245 = vst [vmem:[#allocation2 + $0x80] sm:$0xf0] %v233
    %246 = vst [vmem:[#allocation2 + $0x88] sm:$0xf0] %v234
    %247 = vrot.lane.b32.xlu0 %v33, 92
    %v248 = vpop.permute.xlu0 %247
    %249 = vrot.lane.b32.xlu0 %v34, 92
    %v250 = vpop.permute.xlu0 %249
    %251 = vrot.lane.b32.xlu0 %v35, 92
    %v252 = vpop.permute.xlu0 %251
    %253 = vrot.lane.b32.xlu0 %v36, 92
    %v254 = vpop.permute.xlu0 %253
    %vm255 = vcmask 752640
    %v256 = vsel %vm255, %v248, %v250
    %v257 = vsel %vm255, %v250, %v252
    %v258 = vsel %vm255, %v252, %v254
    %262 = vrot.lane.b32.xlu0 %v40, 92
    %v263 = vpop.permute.xlu0 %262
    %264 = vrot.lane.b32.xlu0 %v41, 92
    %v265 = vpop.permute.xlu0 %264
    %266 = vrot.lane.b32.xlu0 %v42, 92
    %v267 = vpop.permute.xlu0 %266
    %268 = vrot.lane.b32.xlu0 %v65, 92
    %v269 = vpop.permute.xlu0 %268
    %v270 = vsel %vm255, %v263, %v265
    %v271 = vsel %vm255, %v265, %v267
    %v272 = vsel %vm255, %v267, %v269
    %276 = vst [vmem:[#allocation2 + $0x90] sm:$0xf] %v256
    %277 = vst [vmem:[#allocation2 + $0x98] sm:$0xf] %v257
    %278 = vst [vmem:[#allocation2 + $0xa0] sm:$0xf] %v258
    %279 = vst [vmem:[#allocation2 + $0xa8] sm:$0xf] %v270
    %280 = vst [vmem:[#allocation2 + $0xb0] sm:$0xf] %v271
    %281 = vst [vmem:[#allocation2 + $0xb8] sm:$0xf] %v272
    %282 = vrot.lane.b32.xlu0 %v33, 91
    %v283 = vpop.permute.xlu0 %282
    %284 = vrot.lane.b32.xlu0 %v34, 91
    %v285 = vpop.permute.xlu0 %284
    %286 = vrot.lane.b32.xlu0 %v35, 91
    %v287 = vpop.permute.xlu0 %286
    %288 = vrot.lane.b32.xlu0 %v36, 91
    %v289 = vpop.permute.xlu0 %288
    %vm290 = vcmask 744448
    %v291 = vsel %vm290, %v283, %v285
    %v292 = vsel %vm290, %v285, %v287
    %v293 = vsel %vm290, %v287, %v289
    %294 = vrot.lane.b32.xlu0 %v40, 91
    %v295 = vpop.permute.xlu0 %294
    %296 = vrot.lane.b32.xlu0 %v41, 91
    %v297 = vpop.permute.xlu0 %296
    %298 = vrot.lane.b32.xlu0 %v42, 91
    %v299 = vpop.permute.xlu0 %298
    %300 = vrot.lane.b32.xlu0 %v65, 91
    %v301 = vpop.permute.xlu0 %300
    %v302 = vsel %vm290, %v295, %v297
    %v303 = vsel %vm290, %v297, %v299
    %v304 = vsel %vm290, %v299, %v301
    %v305 = vrot.slane %v291, 4
    %v306 = vrot.slane %v292, 4
    %v307 = vrot.slane %v293, 4
    %v308 = vrot.slane %v302, 4
    %v309 = vrot.slane %v303, 4
    %v310 = vrot.slane %v304, 4
    %317 = vst [vmem:[#allocation2 + $0x90] sm:$0xf0] %v305
    %318 = vst [vmem:[#allocation2 + $0x98] sm:$0xf0] %v306
    %319 = vst [vmem:[#allocation2 + $0xa0] sm:$0xf0] %v307
    %320 = vst [vmem:[#allocation2 + $0xa8] sm:$0xf0] %v308
    %321 = vst [vmem:[#allocation2 + $0xb0] sm:$0xf0] %v309
    %322 = vst [vmem:[#allocation2 + $0xb8] sm:$0xf0] %v310
    %323 = vrot.lane.b32.xlu0 %v33, 90
    %v324 = vpop.permute.xlu0 %323
    %325 = vrot.lane.b32.xlu0 %v34, 90
    %v326 = vpop.permute.xlu0 %325
    %327 = vrot.lane.b32.xlu0 %v35, 90
    %v328 = vpop.permute.xlu0 %327
    %329 = vrot.lane.b32.xlu0 %v36, 90
    %v330 = vpop.permute.xlu0 %329
    %vm331 = vcmask 736256
    %v332 = vsel %vm331, %v324, %v326
    %v333 = vsel %vm331, %v326, %v328
    %v334 = vsel %vm331, %v328, %v330
    %338 = vrot.lane.b32.xlu0 %v40, 90
    %v339 = vpop.permute.xlu0 %338
    %340 = vrot.lane.b32.xlu0 %v41, 90
    %v341 = vpop.permute.xlu0 %340
    %342 = vrot.lane.b32.xlu0 %v42, 90
    %v343 = vpop.permute.xlu0 %342
    %344 = vrot.lane.b32.xlu0 %v65, 90
    %v345 = vpop.permute.xlu0 %344
    %v346 = vsel %vm331, %v339, %v341
    %v347 = vsel %vm331, %v341, %v343
    %v348 = vsel %vm331, %v343, %v345
    %352 = vst [vmem:[#allocation2 + $0xc0] sm:$0xf] %v332
    %353 = vst [vmem:[#allocation2 + $0xc8] sm:$0xf] %v333
    %354 = vst [vmem:[#allocation2 + $0xd0] sm:$0xf] %v334
    %355 = vst [vmem:[#allocation2 + $0xd8] sm:$0xf] %v346
    %356 = vst [vmem:[#allocation2 + $0xe0] sm:$0xf] %v347
    %357 = vst [vmem:[#allocation2 + $0xe8] sm:$0xf] %v348
    %v358 = vld [vmem:[%s1] sm:$0xf]
    %v359 = vld [vmem:[#allocation2] sm:$0xff]
    %v360 = vld [vmem:[#allocation2 + $0x8] sm:$0xff]
    %v361 = vld [vmem:[#allocation2 + $0x10] sm:$0xff]
    %v362 = vld [vmem:[#allocation2 + $0x18] sm:$0xff]
    %v363 = vld [vmem:[#allocation2 + $0x20] sm:$0xff]
    %v364 = vld [vmem:[#allocation2 + $0x28] sm:$0xff]
    %v365 = vld [vmem:[#allocation2 + $0x30] sm:$0xff]
    %v366 = vld [vmem:[#allocation2 + $0x38] sm:$0xff]
    %v367 = vld [vmem:[#allocation2 + $0x40] sm:$0xff]
    %v368 = vld [vmem:[#allocation2 + $0x48] sm:$0xff]
    %v369 = vld [vmem:[#allocation2 + $0x50] sm:$0xff]
    %v370 = vld [vmem:[#allocation2 + $0x58] sm:$0xff]
    %v371 = vld [vmem:[#allocation2 + $0x60] sm:$0xff]
    %v372 = vld [vmem:[#allocation2 + $0x68] sm:$0xff]
    %v373 = vld [vmem:[#allocation2 + $0x70] sm:$0xff]
    %v374 = vld [vmem:[#allocation2 + $0x78] sm:$0xff]
    %v375 = vld [vmem:[#allocation2 + $0x80] sm:$0xff]
    %v376 = vld [vmem:[#allocation2 + $0x88] sm:$0xff]
    %v377 = vld [vmem:[#allocation2 + $0x90] sm:$0xff]
    %v378 = vld [vmem:[#allocation2 + $0x98] sm:$0xff]
    %v379 = vld [vmem:[#allocation2 + $0xa0] sm:$0xff]
    %v380 = vld [vmem:[#allocation2 + $0xa8] sm:$0xff]
    %v381 = vld [vmem:[#allocation2 + $0xb0] sm:$0xff]
    %v382 = vld [vmem:[#allocation2 + $0xb8] sm:$0xff]
    %v383 = vld [vmem:[#allocation2 + $0xc0] sm:$0xf]
    %v384 = vld [vmem:[#allocation2 + $0xc8] sm:$0xf]
    %v385 = vld [vmem:[#allocation2 + $0xd0] sm:$0xf]
    %v386 = vld [vmem:[#allocation2 + $0xd8] sm:$0xf]
    %v387 = vld [vmem:[#allocation2 + $0xe0] sm:$0xf]
    %v388 = vld [vmem:[#allocation2 + $0xe8] sm:$0xf]
    %v389 = vpack.c.bf16 %v365, %v359
    %v390 = vpack.c.bf16 %v366, %v360
    %v391 = vpack.c.bf16 %v367, %v361
    %v392 = vpack.c.bf16 %v368, %v362
    %v393 = vpack.c.bf16 %v369, %v363
    %v394 = vpack.c.bf16 %v370, %v364
    %v395 = vpack.c.bf16 %v377, %v371
    %v396 = vpack.c.bf16 %v378, %v372
    %v397 = vpack.c.bf16 %v379, %v373
    %v398 = vpack.c.bf16 %v380, %v374
    %v399 = vpack.c.bf16 %v381, %v375
    %v400 = vpack.c.bf16 %v382, %v376
    %v401 = vpack.c.bf16 %v383, %v383
    %v402 = vpack.c.bf16 %v384, %v384
    %v403 = vpack.c.bf16 %v385, %v385
    %v404 = vpack.c.bf16 %v386, %v386
    %v405 = vpack.c.bf16 %v387, %v387
    %v406 = vpack.c.bf16 %v388, %v388
    %vm407 = vcmask 293888
    %v409 = vsel %vm407, %v358, 0
    %vm411 = vcmask 1041408
    %v413 = vsel %vm411, %v401, 0
    %v416 = vsel %vm411, %v402, 0
    %v419 = vsel %vm411, %v403, 0
    %v422 = vsel %vm411, %v404, 0
    %v425 = vsel %vm411, %v405, 0
    %v428 = vsel %vm411, %v406, 0
    %430 = vmatpush.bf16.msra.mxu0 0
    %431 = vmatpush.bf16.msra.mxu0 0
    %432 = vmatpush.bf16.msra.mxu0 0
    %433 = vmatpush.bf16.msra.mxu0 0
    %434 = vmatpush.bf16.msra.mxu0 0
    %435 = vmatpush.bf16.msra.mxu0 %v413
    %436 = vmatpush.bf16.msra.mxu0 %v395
    %437 = vmatpush.bf16.msra.mxu0 %v389
    %438 = vmatmul.bf16.gmra.mxu0 %v409
    %v439 = vpop.f32.mrf.mxu0
    %v440 = vadd.f32 0.0, %v439
    %v441 = vpop.f32.mrf.mxu0
    %442 = vdwg.mxu0
    %443 = vmatpush.bf16.msra.mxu0 0
    %444 = vmatpush.bf16.msra.mxu0 0
    %445 = vmatpush.bf16.msra.mxu0 0
    %446 = vmatpush.bf16.msra.mxu0 0
    %447 = vmatpush.bf16.msra.mxu0 0
    %448 = vmatpush.bf16.msra.mxu0 %v416
    %449 = vmatpush.bf16.msra.mxu0 %v396
    %450 = vmatpush.bf16.msra.mxu0 %v390
    %451 = vmatmul.bf16.gmra.mxu0 %v409
    %v452 = vpop.f32.mrf.mxu0
    %v453 = vadd.f32 0.0, %v452
    %v454 = vpop.f32.mrf.mxu0
    %455 = vdwg.mxu0
    %456 = vmatpush.bf16.msra.mxu0 0
    %457 = vmatpush.bf16.msra.mxu0 0
    %458 = vmatpush.bf16.msra.mxu0 0
    %459 = vmatpush.bf16.msra.mxu0 0
    %460 = vmatpush.bf16.msra.mxu0 0
    %461 = vmatpush.bf16.msra.mxu0 %v419
    %462 = vmatpush.bf16.msra.mxu0 %v397
    %463 = vmatpush.bf16.msra.mxu0 %v391
    %464 = vmatmul.bf16.gmra.mxu0 %v409
    %v465 = vpop.f32.mrf.mxu0
    %v466 = vadd.f32 0.0, %v465
    %v467 = vpop.f32.mrf.mxu0
    %468 = vdwg.mxu0
    %469 = vmatpush.bf16.msra.mxu0 0
    %470 = vmatpush.bf16.msra.mxu0 0
    %471 = vmatpush.bf16.msra.mxu0 0
    %472 = vmatpush.bf16.msra.mxu0 0
    %473 = vmatpush.bf16.msra.mxu0 0
    %474 = vmatpush.bf16.msra.mxu0 %v422
    %475 = vmatpush.bf16.msra.mxu0 %v398
    %476 = vmatpush.bf16.msra.mxu0 %v392
    %477 = vmatmul.bf16.gmra.mxu0 %v409
    %v478 = vpop.f32.mrf.mxu0
    %v479 = vadd.f32 0.0, %v478
    %v480 = vpop.f32.mrf.mxu0
    %481 = vdwg.mxu0
    %482 = vmatpush.bf16.msra.mxu0 0
    %483 = vmatpush.bf16.msra.mxu0 0
    %484 = vmatpush.bf16.msra.mxu0 0
    %485 = vmatpush.bf16.msra.mxu0 0
    %486 = vmatpush.bf16.msra.mxu0 0
    %487 = vmatpush.bf16.msra.mxu0 %v425
    %488 = vmatpush.bf16.msra.mxu0 %v399
    %489 = vmatpush.bf16.msra.mxu0 %v393
    %490 = vmatmul.bf16.gmra.mxu0 %v409
    %v491 = vpop.f32.mrf.mxu0
    %v492 = vadd.f32 0.0, %v491
    %v493 = vpop.f32.mrf.mxu0
    %494 = vdwg.mxu0
    %495 = vmatpush.bf16.msra.mxu0 0
    %496 = vmatpush.bf16.msra.mxu0 0
    %497 = vmatpush.bf16.msra.mxu0 0
    %498 = vmatpush.bf16.msra.mxu0 0
    %499 = vmatpush.bf16.msra.mxu0 0
    %500 = vmatpush.bf16.msra.mxu0 %v428
    %501 = vmatpush.bf16.msra.mxu0 %v400
    %502 = vmatpush.bf16.msra.mxu0 %v394
    %503 = vmatmul.bf16.gmra.mxu0 %v409
    %v504 = vpop.f32.mrf.mxu0
    %v505 = vadd.f32 0.0, %v504
    %v506 = vpop.f32.mrf.mxu0
    %507 = vdwg.mxu0
    %508 = vst [vmem:[#allocation3] sm:$0xff] %v440
    %509 = vst [vmem:[#allocation3 + $0x8] sm:$0xff] %v453
    %510 = vst [vmem:[#allocation3 + $0x10] sm:$0xff] %v466
    %511 = vst [vmem:[#allocation3 + $0x18] sm:$0xff] %v479
    %512 = vst [vmem:[#allocation3 + $0x20] sm:$0xff] %v492
    %513 = vst [vmem:[#allocation3 + $0x28] sm:$0xff] %v505
    %v514 = vld [vmem:[#allocation3] sm:$0xff]
    %vm515 = vcmask 130048
    %516 = vst.msk [vmem:[#allocation4] sm:$0xff] %vm515, %v514
    %v517 = vld [vmem:[#allocation3] sm:$0xff]
    %519 = vrot.lane.b32.xlu0 %v517, 126
    %v520 = vpop.permute.xlu0 %519
    %vm522 = vcmask 261248
    %523 = vst.msk [vmem:[#allocation4] sm:$0xff] %vm522, %v520
    %v524 = vld [vmem:[#allocation3] sm:$0xff]
    %526 = vrot.lane.b32.xlu0 %v524, 124
    %v527 = vpop.permute.xlu0 %526
    %vm529 = vcmask 392448
    %530 = vst.msk [vmem:[#allocation4] sm:$0xff] %vm529, %v527
    %v531 = vld [vmem:[#allocation3] sm:$0xff]
    %533 = vrot.lane.b32.xlu0 %v531, 122
    %v534 = vpop.permute.xlu0 %533
    %vm536 = vcmask 523648
    %537 = vst.msk [vmem:[#allocation4] sm:$0xff] %vm536, %v534
    %v538 = vld [vmem:[#allocation3] sm:$0xff]
    %540 = vrot.lane.b32.xlu0 %v538, 120
    %v541 = vpop.permute.xlu0 %540
    %vm543 = vcmask 654848
    %544 = vst.msk [vmem:[#allocation4] sm:$0xff] %vm543, %v541
    %v545 = vld [vmem:[#allocation3] sm:$0xff]
    %547 = vrot.lane.b32.xlu0 %v545, 118
    %v548 = vpop.permute.xlu0 %547
    %vm550 = vcmask 786048
    %551 = vst.msk [vmem:[#allocation4] sm:$0xff] %vm550, %v548
    %v552 = vld [vmem:[#allocation3] sm:$0xff]
    %554 = vrot.lane.b32.xlu0 %v552, 116
    %v555 = vpop.permute.xlu0 %554
    %vm557 = vcmask 917248
    %558 = vst.msk [vmem:[#allocation4] sm:$0xff] %vm557, %v555
    %v559 = vld [vmem:[#allocation3] sm:$0xff]
    %v560 = vld [vmem:[#allocation3 + $0x8] sm:$0xff]
    %563 = vrot.lane.b32.xlu0 %v559, 114
    %v564 = vpop.permute.xlu0 %563
    %565 = vrot.lane.b32.xlu0 %v560, 114
    %v566 = vpop.permute.xlu0 %565
    %vm567 = vcmask 932864
    %v568 = vsel %vm567, %v564, %v566
    %vm570 = vcmask 1048448
    %571 = vst.msk [vmem:[#allocation4] sm:$0xff] %vm570, %v568
    %v572 = vld [vmem:[#allocation3 + $0x8] sm:$0xff]
    %574 = vrot.lane.b32.xlu0 %v572, 112
    %v575 = vpop.permute.xlu0 %574
    %577 = vst.msk [vmem:[#allocation4 + $0x8] sm:$0xff] %vm515, %v575
    %v578 = vld [vmem:[#allocation3 + $0x8] sm:$0xff]
    %580 = vrot.lane.b32.xlu0 %v578, 110
    %v581 = vpop.permute.xlu0 %580
    %583 = vst.msk [vmem:[#allocation4 + $0x8] sm:$0xff] %vm522, %v581
    %v584 = vld [vmem:[#allocation3 + $0x8] sm:$0xff]
    %586 = vrot.lane.b32.xlu0 %v584, 108
    %v587 = vpop.permute.xlu0 %586
    %589 = vst.msk [vmem:[#allocation4 + $0x8] sm:$0xff] %vm529, %v587
    %v590 = vld [vmem:[#allocation3 + $0x8] sm:$0xff]
    %592 = vrot.lane.b32.xlu0 %v590, 106
    %v593 = vpop.permute.xlu0 %592
    %595 = vst.msk [vmem:[#allocation4 + $0x8] sm:$0xff] %vm536, %v593
    %v596 = vld [vmem:[#allocation3 + $0x8] sm:$0xff]
    %598 = vrot.lane.b32.xlu0 %v596, 104
    %v599 = vpop.permute.xlu0 %598
    %601 = vst.msk [vmem:[#allocation4 + $0x8] sm:$0xff] %vm543, %v599
    %v602 = vld [vmem:[#allocation3 + $0x8] sm:$0xff]
    %604 = vrot.lane.b32.xlu0 %v602, 102
    %v605 = vpop.permute.xlu0 %604
    %607 = vst.msk [vmem:[#allocation4 + $0x8] sm:$0xff] %vm550, %v605
    %v608 = vld [vmem:[#allocation3 + $0x8] sm:$0xff]
    %v609 = vld [vmem:[#allocation3 + $0x10] sm:$0xff]
    %612 = vrot.lane.b32.xlu0 %v608, 100
    %v613 = vpop.permute.xlu0 %612
    %614 = vrot.lane.b32.xlu0 %v609, 100
    %v615 = vpop.permute.xlu0 %614
    %vm616 = vcmask 818176
    %v617 = vsel %vm616, %v613, %v615
    %619 = vst.msk [vmem:[#allocation4 + $0x8] sm:$0xff] %vm557, %v617
    %v620 = vld [vmem:[#allocation3 + $0x10] sm:$0xff]
    %622 = vrot.lane.b32.xlu0 %v620, 98
    %v623 = vpop.permute.xlu0 %622
    %625 = vst.msk [vmem:[#allocation4 + $0x8] sm:$0xff] %vm570, %v623
    %v626 = vld [vmem:[#allocation3 + $0x18] sm:$0xff]
    %627 = vst.msk [vmem:[#allocation4 + $0x10] sm:$0xff] %vm515, %v626
    %v628 = vld [vmem:[#allocation3 + $0x18] sm:$0xff]
    %630 = vrot.lane.b32.xlu0 %v628, 126
    %v631 = vpop.permute.xlu0 %630
    %633 = vst.msk [vmem:[#allocation4 + $0x10] sm:$0xff] %vm522, %v631
    %v634 = vld [vmem:[#allocation3 + $0x18] sm:$0xff]
    %636 = vrot.lane.b32.xlu0 %v634, 124
    %v637 = vpop.permute.xlu0 %636
    %639 = vst.msk [vmem:[#allocation4 + $0x10] sm:$0xff] %vm529, %v637
    %v640 = vld [vmem:[#allocation3 + $0x18] sm:$0xff]
    %642 = vrot.lane.b32.xlu0 %v640, 122
    %v643 = vpop.permute.xlu0 %642
    %645 = vst.msk [vmem:[#allocation4 + $0x10] sm:$0xff] %vm536, %v643
    %v646 = vld [vmem:[#allocation3 + $0x18] sm:$0xff]
    %648 = vrot.lane.b32.xlu0 %v646, 120
    %v649 = vpop.permute.xlu0 %648
    %651 = vst.msk [vmem:[#allocation4 + $0x10] sm:$0xff] %vm543, %v649
    %v652 = vld [vmem:[#allocation3 + $0x18] sm:$0xff]
    %654 = vrot.lane.b32.xlu0 %v652, 118
    %v655 = vpop.permute.xlu0 %654
    %657 = vst.msk [vmem:[#allocation4 + $0x10] sm:$0xff] %vm550, %v655
    %v658 = vld [vmem:[#allocation3 + $0x18] sm:$0xff]
    %660 = vrot.lane.b32.xlu0 %v658, 116
    %v661 = vpop.permute.xlu0 %660
    %663 = vst.msk [vmem:[#allocation4 + $0x10] sm:$0xff] %vm557, %v661
    %v664 = vld [vmem:[#allocation3 + $0x18] sm:$0xff]
    %v665 = vld [vmem:[#allocation3 + $0x20] sm:$0xff]
    %668 = vrot.lane.b32.xlu0 %v664, 114
    %v669 = vpop.permute.xlu0 %668
    %670 = vrot.lane.b32.xlu0 %v665, 114
    %v671 = vpop.permute.xlu0 %670
    %v672 = vsel %vm567, %v669, %v671
    %674 = vst.msk [vmem:[#allocation4 + $0x10] sm:$0xff] %vm570, %v672
    %v675 = vld [vmem:[#allocation3 + $0x20] sm:$0xff]
    %677 = vrot.lane.b32.xlu0 %v675, 112
    %v678 = vpop.permute.xlu0 %677
    %680 = vst.msk [vmem:[#allocation4 + $0x18] sm:$0xff] %vm515, %v678
    %v681 = vld [vmem:[#allocation3 + $0x20] sm:$0xff]
    %683 = vrot.lane.b32.xlu0 %v681, 110
    %v684 = vpop.permute.xlu0 %683
    %686 = vst.msk [vmem:[#allocation4 + $0x18] sm:$0xff] %vm522, %v684
    %v687 = vld [vmem:[#allocation3 + $0x20] sm:$0xff]
    %689 = vrot.lane.b32.xlu0 %v687, 108
    %v690 = vpop.permute.xlu0 %689
    %692 = vst.msk [vmem:[#allocation4 + $0x18] sm:$0xff] %vm529, %v690
    %v693 = vld [vmem:[#allocation3 + $0x20] sm:$0xff]
    %695 = vrot.lane.b32.xlu0 %v693, 106
    %v696 = vpop.permute.xlu0 %695
    %698 = vst.msk [vmem:[#allocation4 + $0x18] sm:$0xff] %vm536, %v696
    %v699 = vld [vmem:[#allocation3 + $0x20] sm:$0xff]
    %701 = vrot.lane.b32.xlu0 %v699, 104
    %v702 = vpop.permute.xlu0 %701
    %704 = vst.msk [vmem:[#allocation4 + $0x18] sm:$0xff] %vm543, %v702
    %v705 = vld [vmem:[#allocation3 + $0x20] sm:$0xff]
    %707 = vrot.lane.b32.xlu0 %v705, 102
    %v708 = vpop.permute.xlu0 %707
    %710 = vst.msk [vmem:[#allocation4 + $0x18] sm:$0xff] %vm550, %v708
    %v711 = vld [vmem:[#allocation3 + $0x20] sm:$0xff]
    %v712 = vld [vmem:[#allocation3 + $0x28] sm:$0xff]
    %715 = vrot.lane.b32.xlu0 %v711, 100
    %v716 = vpop.permute.xlu0 %715
    %717 = vrot.lane.b32.xlu0 %v712, 100
    %v718 = vpop.permute.xlu0 %717
    %v719 = vsel %vm616, %v716, %v718
    %721 = vst.msk [vmem:[#allocation4 + $0x18] sm:$0xff] %vm557, %v719
    %v722 = vld [vmem:[#allocation3 + $0x28] sm:$0xff]
    %724 = vrot.lane.b32.xlu0 %v722, 98
    %v725 = vpop.permute.xlu0 %724
    %727 = vst.msk [vmem:[#allocation4 + $0x18] sm:$0xff] %vm570, %v725
    %v728 = vld [vmem:[#allocation4] sm:$0xff]
    %v729 = vld [vmem:[#allocation4 + $0x8] sm:$0xff]
    %v730 = vld [vmem:[#allocation4 + $0x10] sm:$0xff]
    %v731 = vld [vmem:[#allocation4 + $0x18] sm:$0xff]
    %v732 = vadd.f32 %v728, %v729
    %v733 = vadd.f32 %v732, %v730
    %v734 = vadd.f32 %v733, %v731
    %735 = vadd.xlane.f32.xlu0 %v734
    %v736 = vpop.xlane.xlu0 %735
    %v737 = vmul.f32 %v736, 0.001953125
    %v738 = vsub.f32 %v728, %v737
    %v739 = vsub.f32 %v729, %v737
    %v740 = vsub.f32 %v730, %v737
    %v741 = vsub.f32 %v731, %v737
    %v742 = vmul.f32 %v738, %v738
    %v743 = vmul.f32 %v739, %v739
    %v744 = vmul.f32 %v740, %v740
    %v745 = vmul.f32 %v741, %v741
    %v746 = vadd.f32 %v742, %v743
    %v747 = vadd.f32 %v746, %v744
    %v748 = vadd.f32 %v747, %v745
    %749 = vadd.xlane.f32.xlu0 %v748
    %v750 = vpop.xlane.xlu0 %749
    %v751 = vmul.f32 %v750, 0.001953125
    %v752 = vld [vmem:[%s2] sm:$0xff]
    %v753 = vadd.f32 %v751, 1e-05
    %v754 = vrsqrt.pop %v753
    %v755 = vmul.f32 %v754, %v753
    %v756 = vmul.f32 %v755, %v754
    %v757 = vmul.f32 0.5, %v756
    %v758 = vsub.f32 1.5, %v757
    %v759 = vmul.f32 %v754, %v758
    %vm760 = vweird.f32 %v753
    %vm761 = vweird.f32 %v754
    %vm762 = vmor %vm760, %vm761
    %v763 = vsel %vm762, %v754, %v759
    %v764 = vmul.f32 %v752, %v763
    %766 = vset.pattern.permute.xlu0 0
    %767 = vperm.xlu0 %766, %v764
    %v768 = vpop.permute.xlu0 %767
    %v770 = vmul.f32 %v738, %v768
    %v771 = vmul.f32 %v739, %v768
    %v772 = vmul.f32 %v740, %v768
    %v773 = vmul.f32 %v741, %v768
    %v774 = vld [vmem:[%s3] sm:$0xff]
    %776 = vset.pattern.permute.xlu0 0
    %777 = vperm.xlu0 %776, %v774
    %v778 = vpop.permute.xlu0 %777
    %v780 = vadd.f32 %v770, %v778
    %v781 = vadd.f32 %v771, %v778
    %v782 = vadd.f32 %v772, %v778
    %v783 = vadd.f32 %v773, %v778
    %v784 = vmax.f32 %v780, 0.0
    %v785 = vmax.f32 %v781, 0.0
    %v786 = vmax.f32 %v782, 0.0
    %v787 = vmax.f32 %v783, 0.0
    %788 = vst [vmem:[#allocation8] sm:$0xff] %v784
    %789 = vst [vmem:[#allocation8 + $0x8] sm:$0xff] %v785
    %s790 = scalar_lea.vmem [#allocation8], 16
    %791 = vst [vmem:[%s790] sm:$0xff] %v786
    %792 = vst [vmem:[%s790 + $0x8] sm:$0xff] %v787
    // Predicated region
    $region22: #{tpu_custom_call.1} parent=1 // pred_check
      _
    $region23: #{tpu_custom_call.1} parent=1 // pred_check_branch
      %794 = sbr.rel (0) target = $region25
    $region24: #{tpu_custom_call.1} parent=1 // pred_region
      %796 = vsyncadd [#allocation7], 0
      %s797 = sshll.u32 [#allocation8], 4
      %s798 = int_to_ptr.vmem [resolvable:$true] %s797
      %s799 = sshll.u32 %s4, 4
      %s800 = int_to_ptr.hbm [resolvable:$true] %s799
      %805 = dma.vmem_to_hbm [thread:$0]  %s798, 512, %s800, [#allocation7], 256, 256, 16
    $region25: #{tpu_custom_call.1} parent=1 // pred_fallthru
      _
    // Predicated region
    $region26: #{tpu_custom_call.1} parent=1 // pred_check
      _
    $region27: #{tpu_custom_call.1} parent=1 // pred_check_branch
      %807 = sbr.rel (0) target = $region29
    $region28: #{tpu_custom_call.1} parent=1 // pred_region
      %809 = dma.done [#allocation7], 512
    $region29: #{tpu_custom_call.1} parent=1 // pred_fallthru
      _
    %810 = vsyncpa [#allocation6], 1
    %811 = vsyncpa [#allocation7], 1

</llo_original>
